<compile_context>
chip_gen: v5e
topology: v5e:2x2
jax: 0.10.0
libtpu: 0.0.40
codegen_flags: <defaults>
</compile_context>

<pallas_src>
from functools import partial
import math

import numpy as np
import jax
import jax.numpy as jnp
from jax.experimental import pallas as pl
from jax.experimental.pallas import tpu as pltpu


# --------------------------------------------------------------------------
# Kernel 1: per-frame log power (tiled over frame-rows, pipelined).
# --------------------------------------------------------------------------
def log_power_kernel(x_ref, lo_ref, *, fold, block_size):
    # x_ref : (tile_rows, fold*block_size) f32 -- `fold` frames per sublane
    #                                             row, samples on lanes.
    # lo_ref: (fold, tile_rows)            f32 -- log power, frames on lanes.
    inv_b = jnp.float32(1.0 / block_size)
    for f in range(fold):                            # static, small (1..16)
        chunk = x_ref[:, f * block_size:(f + 1) * block_size]        # (R, B)
        p = jnp.sum(chunk * chunk, axis=-1, keepdims=True) * inv_b   # (R, 1)
        lo = jnp.log(p + 1e-15)                                      # (R, 1)
        # column -> lane-dense row; tiny XLU relayout on otherwise-idle XLU.
        lo_ref[pl.ds(f, 1), :] = jnp.transpose(lo)                   # (1, R)


# --------------------------------------------------------------------------
# Kernel 2: 'same' Hamming convolution as K shifted adds (VPU only).
# --------------------------------------------------------------------------
def smooth_kernel(lo_ref, out_ref, *, win, pad, half, n):
    # lo_ref : (1, n + 2*pad) f32 -- zero-padded log-power row (lane-dense).
    # out_ref: (1, n)         f32 -- smoothed log loudness (lane-dense).
    # NOTE: for very large kernel_size the K lane-misaligned slices could be
    # replaced by incremental pltpu.roll; for typical K (~9) this is minor.
    lo = lo_ref[...]
    acc = jnp.zeros((1, n), jnp.float32)
    for t, w in enumerate(win):                      # K static shifted adds
        start = pad + half - t                       # >= 0 by construction
        acc = acc + jnp.float32(w) * lo[:, start:start + n]
    out_ref[...] = acc


# --------------------------------------------------------------------------
# Wrapper
# --------------------------------------------------------------------------
def _round_up(v, m):
    return ((v + m - 1) // m) * m


def _vmem_capacity_bytes():
    try:
        info = pltpu.get_tpu_info()
        cap = getattr(info, "vmem_capacity_bytes", None)
        if cap:
            return int(cap)
    except Exception:
        pass
    return 64 << 20          # conservative default (v7x per-core VMEM)


def loudness(x, block_size, kernel_size, tile_rows=None):
    """Pallas equivalent of Loudness(block_size, kernel_size).forward(x)."""
    flat = jnp.asarray(x, jnp.float32).reshape(-1)
    total = int(flat.shape[0])
    assert total % block_size == 0, "signal length must divide block_size"
    n_frames = total // block_size

    # ---- fold frames so the streamed block's minor dim is lane-dense -------
    fold = 128 // math.gcd(block_size, 128)
    width = fold * block_size                        # multiple of 128
    n_frames_f = _round_up(n_frames, fold)
    if n_frames_f != n_frames:                       # zero frames, ignored later
        flat = jnp.pad(flat, (0, (n_frames_f - n_frames) * block_size))
    n_rows = n_frames_f // fold
    xr = flat.reshape(n_rows, width)

    # ---- generation-aware tile sizing (payload ~ VMEM/8, 2..16 MiB) --------
    cap = _vmem_capacity_bytes()
    row_bytes = width * 4
    if tile_rows is None:
        payload = min(max(cap // 8, 2 << 20), 16 << 20)
        target = max(128, ((payload // row_bytes) // 128) * 128)
        if n_rows > target:
            tile_rows = target
        elif n_rows >= 256:
            # keep >= 2 balanced tiles so v7x can split the "parallel" axis
            # across its 2 TensorCores.
            tile_rows = _round_up(pl.cdiv(n_rows, 2), 128)
        else:
            tile_rows = _round_up(n_rows, 8)         # single full-extent block
    else:
        tile_rows = int(tile_rows)
        if tile_rows < n_rows:
            tile_rows = max(128, _round_up(tile_rows, 128))  # lane-dense out
        if tile_rows >= n_rows:
            tile_rows = _round_up(n_rows, 8)

    grid_m = pl.cdiv(n_rows, tile_rows)
    n_pad_rows = grid_m * tile_rows
    if n_pad_rows != n_rows:                         # zero rows, ignored later
        xr = jnp.pad(xr, ((0, n_pad_rows - n_rows), (0, 0)))

    tile_bytes = tile_rows * row_bytes
    # double-buffered input + elementwise/reduce intermediates + slack,
    # capped well below the physical per-core VMEM.
    vmem_limit = int(min(3 * tile_bytes + (16 << 20), (cap // 8) * 7))

    lo2d = pl.pallas_call(
        partial(log_power_kernel, fold=fold, block_size=block_size),
        out_shape=jax.ShapeDtypeStruct((fold, n_pad_rows), jnp.float32),
        grid=(grid_m,),
        in_specs=[pl.BlockSpec((tile_rows, width), lambda i: (i, 0))],
        out_specs=pl.BlockSpec((fold, tile_rows), lambda i: (0, i)),
        compiler_params=pltpu.CompilerParams(
            dimension_semantics=("parallel",),
            vmem_limit_bytes=vmem_limit),
    )(xr)

    # frame (r*fold + f) lives at lo2d[f, r]; un-fold with tiny XLA glue.
    lo_row = jnp.transpose(lo2d).reshape(-1)[:n_frames].reshape(1, n_frames)

    # ---- smoothing conv: np.convolve(lo, hamming(K), 'same') ---------------
    k = int(kernel_size)
    win = tuple(float(w) for w in np.hamming(k))     # static taps (match numpy)
    half = (k - 1) // 2
    pad = k - 1                                      # zero-extension both sides
    lo_padded = jnp.pad(lo_row, ((0, 0), (pad, pad)))  # (1, N + 2*(K-1))

    out = pl.pallas_call(
        partial(smooth_kernel, win=win, pad=pad, half=half, n=n_frames),
        out_shape=jax.ShapeDtypeStruct((1, n_frames), jnp.float32),
        grid=(1,),
        in_specs=[pl.BlockSpec((1, n_frames + 2 * pad), lambda i: (0, 0))],
        out_specs=pl.BlockSpec((1, n_frames), lambda i: (0, 0)),
        compiler_params=pltpu.CompilerParams(
            dimension_semantics=("arbitrary",)),
    )(lo_padded)

    return out.reshape(-1)


# --------------------------------------------------------------------------
# Pure numpy reference mirroring the PyTorch module exactly.
# --------------------------------------------------------------------------
def loudness_reference(x_np, block_size, kernel_size):
    xr = np.asarray(x_np, dtype=np.float32).reshape(-1, block_size)
    lo = np.log(np.mean(xr ** 2, -1) + 1e-15).reshape(-1)
    return np.convolve(lo, np.hamming(kernel_size), 'same')


if __name__ == "__main__":
    kernel_size = 9

    # 1) Default path, block_size=64 (fold=2): batch=2, length 8000 -> 250
    #    frames; single lane-dense block.
    block_size = 64
    x = jax.random.normal(jax.random.PRNGKey(0), (2, 8000), dtype=jnp.float32)
    ref = loudness_reference(np.asarray(x), block_size, kernel_size)
    out = jax.block_until_ready(loudness(x, block_size, kernel_size))
    np.testing.assert_allclose(np.asarray(out), ref, rtol=1e-3, atol=1e-3)

    # 2) Multi-tile pipelined path with forced 128-row tiles + row padding:
    #    2 x 64000 samples -> 2000 frames -> 1000 rows -> grid of 8 tiles.
    x2 = jax.random.normal(jax.random.PRNGKey(0), (2, 64000), dtype=jnp.float32)
    ref2 = loudness_reference(np.asarray(x2), block_size, kernel_size)
    out2 = jax.block_until_ready(
        loudness(x2, block_size, kernel_size, tile_rows=128))
    np.testing.assert_allclose(np.asarray(out2), ref2, rtol=1e-3, atol=1e-3)

    # 3) Lane-aligned block_size (fold=1) path.
    block_size3 = 256
    x3 = jax.random.normal(jax.random.PRNGKey(0), (2, 8192), dtype=jnp.float32)
    ref3 = loudness_reference(np.asarray(x3), block_size3, kernel_size)
    out3 = jax.block_until_ready(loudness(x3, block_size3, kernel_size))
    np.testing.assert_allclose(np.asarray(out3), ref3, rtol=1e-3, atol=1e-3)

    print("KERNEL_OK")
</pallas_src>

<mosaic_0001>
module attributes {stable_mosaic.version = 11 : i64} {
  func.func @log_power_kernel(%arg0: i32, %arg1: memref<128x128xf32, #tpu.memory_space<vmem>>, %arg2: memref<2x128xf32, #tpu.memory_space<vmem>>) attributes {dimension_semantics = [#tpu.dimension_semantics<parallel>], iteration_bounds = array<i64: 1>, scalar_prefetch = 0 : i64, scratch_operands = 0 : i64, tpu.core_type = #tpu.core_type<tc>, window_params = [{transform_indices = @transform_0, window_bounds = array<i64: 128, 128>}, {transform_indices = @transform_1, window_bounds = array<i64: 2, 128>}]} {
    %c0 = arith.constant 0 : index
    %c0_0 = arith.constant 0 : index
    %0 = vector.load %arg1[%c0, %c0_0] : memref<128x128xf32, #tpu.memory_space<vmem>>, vector<128x64xf32>
    %1 = arith.mulf %0, %0 : vector<128x64xf32>
    %cst = arith.constant dense<0.000000e+00> : vector<128xf32>
    %2 = vector.multi_reduction <add>, %1, %cst [1] : vector<128x64xf32> to vector<128xf32>
    %3 = vector.shape_cast %2 : vector<128xf32> to vector<128x1xf32>
    %cst_1 = arith.constant 1.562500e-02 : f32
    %4 = vector.broadcast %cst_1 : f32 to vector<128x1xf32>
    %5 = arith.mulf %3, %4 : vector<128x1xf32>
    %cst_2 = arith.constant 1.000000e-15 : f32
    %6 = vector.broadcast %cst_2 : f32 to vector<128x1xf32>
    %7 = arith.addf %5, %6 : vector<128x1xf32>
    %8 = math.log %7 : vector<128x1xf32>
    %9 = tpu.transpose %8, [1, 0] : vector<128x1xf32> -> vector<1x128xf32>
    %c0_3 = arith.constant 0 : index
    %c0_4 = arith.constant 0 : index
    %10 = vector.load %arg2[%c0_3, %c0_4] : memref<2x128xf32, #tpu.memory_space<vmem>>, vector<1x128xf32>
    tpu.vector_store %arg2[%c0_3, %c0_4], %9 {strides = array<i32>} : memref<2x128xf32, #tpu.memory_space<vmem>>, vector<1x128xf32>,
    %c0_5 = arith.constant 0 : index
    %c64 = arith.constant 64 : index
    %11 = vector.load %arg1[%c0_5, %c64] : memref<128x128xf32, #tpu.memory_space<vmem>>, vector<128x64xf32>
    %12 = arith.mulf %11, %11 : vector<128x64xf32>
    %cst_6 = arith.constant dense<0.000000e+00> : vector<128xf32>
    %13 = vector.multi_reduction <add>, %12, %cst_6 [1] : vector<128x64xf32> to vector<128xf32>
    %14 = vector.shape_cast %13 : vector<128xf32> to vector<128x1xf32>
    %cst_7 = arith.constant 1.562500e-02 : f32
    %15 = vector.broadcast %cst_7 : f32 to vector<128x1xf32>
    %16 = arith.mulf %14, %15 : vector<128x1xf32>
    %cst_8 = arith.constant 1.000000e-15 : f32
    %17 = vector.broadcast %cst_8 : f32 to vector<128x1xf32>
    %18 = arith.addf %16, %17 : vector<128x1xf32>
    %19 = math.log %18 : vector<128x1xf32>
    %20 = tpu.transpose %19, [1, 0] : vector<128x1xf32> -> vector<1x128xf32>
    %c1 = arith.constant 1 : index
    %c0_9 = arith.constant 0 : index
    %21 = vector.load %arg2[%c1, %c0_9] : memref<2x128xf32, #tpu.memory_space<vmem>>, vector<1x128xf32>
    tpu.vector_store %arg2[%c1, %c0_9], %20 {strides = array<i32>} : memref<2x128xf32, #tpu.memory_space<vmem>>, vector<1x128xf32>,
    return
  }
  func.func @transform_0(%arg0: i32) -> (i32, i32) {
    %c0_i32 = arith.constant 0 : i32
    %c0_i32_0 = arith.constant 0 : i32
    return %arg0, %c0_i32 : i32, i32
  }
  func.func @transform_1(%arg0: i32) -> (i32, i32) {
    %c0_i32 = arith.constant 0 : i32
    %c0_i32_0 = arith.constant 0 : i32
    return %c0_i32, %arg0 : i32, i32
  }
}

</mosaic_0001>

<llo_original>
// kernel: tpu_custom_call.1
$region0: #{tpu_custom_call.1}
  #allocation0 [shape = 'u32[]', space=smem, size = 0x4, offset = 0x4, fixed_abs, tag = 'smem constant byte address 0x4 - core index']
  #allocation1 [shape = 'u32[72,128]{1,0:T(1,128)}', space=vmem, size = 0x9000, scoped, tag = 'internal scratch']
  %s0 = inlined_call_operand.hbm [shape: f32[128,128], index: 0, kind: input, shape index: {}]
  %s1 = inlined_call_operand.hbm [shape: f32[2,128], index: 1, kind: output, shape index: {}]
  %s2 = sld [smem:[#allocation0]]
  $region18: #{tpu_custom_call.1} parent=0
    _
  %s4 = ssub.s32 1, %s2
  %s5 = scalar_select 0, %s4, %s2
  $region1: #{tpu_custom_call.1} parent=0
    #allocation2 [shape = 'u8[65536]{0}', space=vmem, size = 0x10000, scoped, tag = 'input window, operand 0, single buffered']
    #allocation3 [shape = 's32[1]{0}', space=sflag, size = 0x4, scoped, tag = 'scoped memory for tpu_custom_call.1']
    #allocation4 [shape = 's32[1]{0}', space=sflag, size = 0x4, scoped, tag = 'scoped memory for tpu_custom_call.1']
    #allocation5 [shape = 'u8[1024]{0}', space=vmem, size = 0x400, scoped, tag = 'output window, operand 0, single buffered']
    %6 = vsyncpa [#allocation3], 0
    %7 = vsyncpa [#allocation4], 0
    // Predicated region
    $region2: #{tpu_custom_call.1} parent=1 // pred_check
      _
    $region3: #{tpu_custom_call.1} parent=1 // pred_check_branch
      %9 = sbr.rel (0) target = $region5
    $region4: #{tpu_custom_call.1} parent=1 // pred_region
      %11 = vsyncadd [#allocation3], 0
      %s12 = sshll.u32 %s0, 4
      %s13 = int_to_ptr.hbm [resolvable:$true] %s12
      %s14 = sshll.u32 [#allocation2], 4
      %s15 = int_to_ptr.vmem [resolvable:$true] %s14
      %20 = dma.hbm_to_vmem [thread:$0]  %s13, 2048, %s15, [#allocation3], 128, 128, 8
    $region5: #{tpu_custom_call.1} parent=1 // pred_fallthru
      _
    // Predicated region
    $region6: #{tpu_custom_call.1} parent=1 // pred_check
      _
    $region7: #{tpu_custom_call.1} parent=1 // pred_check_branch
      %22 = sbr.rel (0) target = $region9
    $region8: #{tpu_custom_call.1} parent=1 // pred_region
      %24 = dma.done [#allocation3], 2048
    $region9: #{tpu_custom_call.1} parent=1 // pred_fallthru
      _
    %v25 = vld [vmem:[#allocation2] sm:$0xff]
    %v26 = vld [vmem:[#allocation2 + $0x8] sm:$0xff]
    %v27 = vld [vmem:[#allocation2 + $0x10] sm:$0xff]
    %v28 = vld [vmem:[#allocation2 + $0x18] sm:$0xff]
    %v29 = vld [vmem:[#allocation2 + $0x20] sm:$0xff]
    %v30 = vld [vmem:[#allocation2 + $0x28] sm:$0xff]
    %v31 = vld [vmem:[#allocation2 + $0x30] sm:$0xff]
    %v32 = vld [vmem:[#allocation2 + $0x38] sm:$0xff]
    %v33 = vld [vmem:[#allocation2 + $0x40] sm:$0xff]
    %v34 = vld [vmem:[#allocation2 + $0x48] sm:$0xff]
    %v35 = vld [vmem:[#allocation2 + $0x50] sm:$0xff]
    %v36 = vld [vmem:[#allocation2 + $0x58] sm:$0xff]
    %v37 = vld [vmem:[#allocation2 + $0x60] sm:$0xff]
    %v38 = vld [vmem:[#allocation2 + $0x68] sm:$0xff]
    %v39 = vld [vmem:[#allocation2 + $0x70] sm:$0xff]
    %v40 = vld [vmem:[#allocation2 + $0x78] sm:$0xff]
    %v41 = vmul.f32 %v25, %v25
    %v42 = vmul.f32 %v26, %v26
    %v43 = vmul.f32 %v27, %v27
    %v44 = vmul.f32 %v28, %v28
    %v45 = vmul.f32 %v29, %v29
    %v46 = vmul.f32 %v30, %v30
    %v47 = vmul.f32 %v31, %v31
    %v48 = vmul.f32 %v32, %v32
    %v49 = vmul.f32 %v33, %v33
    %v50 = vmul.f32 %v34, %v34
    %v51 = vmul.f32 %v35, %v35
    %v52 = vmul.f32 %v36, %v36
    %v53 = vmul.f32 %v37, %v37
    %v54 = vmul.f32 %v38, %v38
    %v55 = vmul.f32 %v39, %v39
    %v56 = vmul.f32 %v40, %v40
    %vm57 = vcmask 523264
    %v58 = vsel %vm57, %v41, 0.0
    %59 = vadd.xlane.f32.xlu0 %v58
    %v60 = vpop.xlane.xlu0 %59
    %v61 = vsel %vm57, %v42, 0.0
    %62 = vadd.xlane.f32.xlu0 %v61
    %v63 = vpop.xlane.xlu0 %62
    %v64 = vsel %vm57, %v43, 0.0
    %65 = vadd.xlane.f32.xlu0 %v64
    %v66 = vpop.xlane.xlu0 %65
    %v67 = vsel %vm57, %v44, 0.0
    %68 = vadd.xlane.f32.xlu0 %v67
    %v69 = vpop.xlane.xlu0 %68
    %v70 = vsel %vm57, %v45, 0.0
    %71 = vadd.xlane.f32.xlu0 %v70
    %v72 = vpop.xlane.xlu0 %71
    %v73 = vsel %vm57, %v46, 0.0
    %74 = vadd.xlane.f32.xlu0 %v73
    %v75 = vpop.xlane.xlu0 %74
    %v76 = vsel %vm57, %v47, 0.0
    %77 = vadd.xlane.f32.xlu0 %v76
    %v78 = vpop.xlane.xlu0 %77
    %v79 = vsel %vm57, %v48, 0.0
    %80 = vadd.xlane.f32.xlu0 %v79
    %v81 = vpop.xlane.xlu0 %80
    %v82 = vsel %vm57, %v49, 0.0
    %83 = vadd.xlane.f32.xlu0 %v82
    %v84 = vpop.xlane.xlu0 %83
    %v85 = vsel %vm57, %v50, 0.0
    %86 = vadd.xlane.f32.xlu0 %v85
    %v87 = vpop.xlane.xlu0 %86
    %v88 = vsel %vm57, %v51, 0.0
    %89 = vadd.xlane.f32.xlu0 %v88
    %v90 = vpop.xlane.xlu0 %89
    %v91 = vsel %vm57, %v52, 0.0
    %92 = vadd.xlane.f32.xlu0 %v91
    %v93 = vpop.xlane.xlu0 %92
    %v94 = vsel %vm57, %v53, 0.0
    %95 = vadd.xlane.f32.xlu0 %v94
    %v96 = vpop.xlane.xlu0 %95
    %v97 = vsel %vm57, %v54, 0.0
    %98 = vadd.xlane.f32.xlu0 %v97
    %v99 = vpop.xlane.xlu0 %98
    %v100 = vsel %vm57, %v55, 0.0
    %101 = vadd.xlane.f32.xlu0 %v100
    %v102 = vpop.xlane.xlu0 %101
    %v103 = vsel %vm57, %v56, 0.0
    %104 = vadd.xlane.f32.xlu0 %v103
    %v105 = vpop.xlane.xlu0 %104
    %v106 = vmul.f32 %v60, 0.015625
    %v107 = vmul.f32 %v63, 0.015625
    %v108 = vmul.f32 %v66, 0.015625
    %v109 = vmul.f32 %v69, 0.015625
    %v110 = vmul.f32 %v72, 0.015625
    %v111 = vmul.f32 %v75, 0.015625
    %v112 = vmul.f32 %v78, 0.015625
    %v113 = vmul.f32 %v81, 0.015625
    %v114 = vmul.f32 %v84, 0.015625
    %v115 = vmul.f32 %v87, 0.015625
    %v116 = vmul.f32 %v90, 0.015625
    %v117 = vmul.f32 %v93, 0.015625
    %v118 = vmul.f32 %v96, 0.015625
    %v119 = vmul.f32 %v99, 0.015625
    %v120 = vmul.f32 %v102, 0.015625
    %v121 = vmul.f32 %v105, 0.015625
    %v122 = vadd.f32 %v106, 1e-15
    %v123 = vadd.f32 %v107, 1e-15
    %v124 = vadd.f32 %v108, 1e-15
    %v125 = vadd.f32 %v109, 1e-15
    %v126 = vadd.f32 %v110, 1e-15
    %v127 = vadd.f32 %v111, 1e-15
    %v128 = vadd.f32 %v112, 1e-15
    %v129 = vadd.f32 %v113, 1e-15
    %v130 = vadd.f32 %v114, 1e-15
    %v131 = vadd.f32 %v115, 1e-15
    %v132 = vadd.f32 %v116, 1e-15
    %v133 = vadd.f32 %v117, 1e-15
    %v134 = vadd.f32 %v118, 1e-15
    %v135 = vadd.f32 %v119, 1e-15
    %v136 = vadd.f32 %v120, 1e-15
    %v137 = vadd.f32 %v121, 1e-15
    %v138 = vlog2.pop %v122
    %v139 = vmul.f32 %v138, 0.6931472
    %v140 = vlog2.pop %v123
    %v141 = vmul.f32 %v140, 0.6931472
    %v142 = vlog2.pop %v124
    %v143 = vmul.f32 %v142, 0.6931472
    %v144 = vlog2.pop %v125
    %v145 = vmul.f32 %v144, 0.6931472
    %v146 = vlog2.pop %v126
    %v147 = vmul.f32 %v146, 0.6931472
    %v148 = vlog2.pop %v127
    %v149 = vmul.f32 %v148, 0.6931472
    %v150 = vlog2.pop %v128
    %v151 = vmul.f32 %v150, 0.6931472
    %v152 = vlog2.pop %v129
    %v153 = vmul.f32 %v152, 0.6931472
    %v154 = vlog2.pop %v130
    %v155 = vmul.f32 %v154, 0.6931472
    %v156 = vlog2.pop %v131
    %v157 = vmul.f32 %v156, 0.6931472
    %v158 = vlog2.pop %v132
    %v159 = vmul.f32 %v158, 0.6931472
    %v160 = vlog2.pop %v133
    %v161 = vmul.f32 %v160, 0.6931472
    %v162 = vlog2.pop %v134
    %v163 = vmul.f32 %v162, 0.6931472
    %v164 = vlog2.pop %v135
    %v165 = vmul.f32 %v164, 0.6931472
    %v166 = vlog2.pop %v136
    %v167 = vmul.f32 %v166, 0.6931472
    %v168 = vlog2.pop %v137
    %v169 = vmul.f32 %v168, 0.6931472
    %170 = vxpose.xlu0.b32.start [1/16] %v139, 128
    %171 = vxpose.xlu0.b32.cont [2/16] %v141, 128
    %172 = vxpose.xlu0.b32.cont [3/16] %v143, 128
    %173 = vxpose.xlu0.b32.cont [4/16] %v145, 128
    %174 = vxpose.xlu0.b32.cont [5/16] %v147, 128
    %175 = vxpose.xlu0.b32.cont [6/16] %v149, 128
    %176 = vxpose.xlu0.b32.cont [7/16] %v151, 128
    %177 = vxpose.xlu0.b32.cont [8/16] %v153, 128
    %178 = vxpose.xlu0.b32.cont [9/16] %v155, 128
    %179 = vxpose.xlu0.b32.cont [10/16] %v157, 128
    %180 = vxpose.xlu0.b32.cont [11/16] %v159, 128
    %181 = vxpose.xlu0.b32.cont [12/16] %v161, 128
    %182 = vxpose.xlu0.b32.cont [13/16] %v163, 128
    %183 = vxpose.xlu0.b32.cont [14/16] %v165, 128
    %184 = vxpose.xlu0.b32.cont [15/16] %v167, 128
    %185 = vxpose.xlu0.b32.end [16/16] %v169, 128
    %v186 = vpop.trf.xlu0
    %v187 = vpop.trf.xlu0
    %v188 = vpop.trf.xlu0
    %v189 = vpop.trf.xlu0
    %v190 = vpop.trf.xlu0
    %v191 = vpop.trf.xlu0
    %v192 = vpop.trf.xlu0
    %v193 = vpop.trf.xlu0
    %v194 = vpop.trf.xlu0
    %v195 = vpop.trf.xlu0
    %v196 = vpop.trf.xlu0
    %v197 = vpop.trf.xlu0
    %v198 = vpop.trf.xlu0
    %v199 = vpop.trf.xlu0
    %v200 = vpop.trf.xlu0
    %v201 = vpop.trf.xlu0
    %202 = vst [vmem:[#allocation5] sm:$0x1] %v186
    %v203 = vld [vmem:[#allocation2] sm:$0xff]
    %v204 = vld [vmem:[#allocation2 + $0x8] sm:$0xff]
    %v205 = vld [vmem:[#allocation2 + $0x10] sm:$0xff]
    %v206 = vld [vmem:[#allocation2 + $0x18] sm:$0xff]
    %v207 = vld [vmem:[#allocation2 + $0x20] sm:$0xff]
    %v208 = vld [vmem:[#allocation2 + $0x28] sm:$0xff]
    %v209 = vld [vmem:[#allocation2 + $0x30] sm:$0xff]
    %v210 = vld [vmem:[#allocation2 + $0x38] sm:$0xff]
    %v211 = vld [vmem:[#allocation2 + $0x40] sm:$0xff]
    %v212 = vld [vmem:[#allocation2 + $0x48] sm:$0xff]
    %v213 = vld [vmem:[#allocation2 + $0x50] sm:$0xff]
    %v214 = vld [vmem:[#allocation2 + $0x58] sm:$0xff]
    %v215 = vld [vmem:[#allocation2 + $0x60] sm:$0xff]
    %v216 = vld [vmem:[#allocation2 + $0x68] sm:$0xff]
    %v217 = vld [vmem:[#allocation2 + $0x70] sm:$0xff]
    %v218 = vld [vmem:[#allocation2 + $0x78] sm:$0xff]
    %v219 = vmul.f32 %v203, %v203
    %v220 = vmul.f32 %v204, %v204
    %v221 = vmul.f32 %v205, %v205
    %v222 = vmul.f32 %v206, %v206
    %v223 = vmul.f32 %v207, %v207
    %v224 = vmul.f32 %v208, %v208
    %v225 = vmul.f32 %v209, %v209
    %v226 = vmul.f32 %v210, %v210
    %v227 = vmul.f32 %v211, %v211
    %v228 = vmul.f32 %v212, %v212
    %v229 = vmul.f32 %v213, %v213
    %v230 = vmul.f32 %v214, %v214
    %v231 = vmul.f32 %v215, %v215
    %v232 = vmul.f32 %v216, %v216
    %v233 = vmul.f32 %v217, %v217
    %v234 = vmul.f32 %v218, %v218
    %251 = vrot.lane.b32.xlu0 %v219, 64
    %v252 = vpop.permute.xlu0 %251
    %253 = vrot.lane.b32.xlu0 %v220, 64
    %v254 = vpop.permute.xlu0 %253
    %255 = vrot.lane.b32.xlu0 %v221, 64
    %v256 = vpop.permute.xlu0 %255
    %257 = vrot.lane.b32.xlu0 %v222, 64
    %v258 = vpop.permute.xlu0 %257
    %259 = vrot.lane.b32.xlu0 %v223, 64
    %v260 = vpop.permute.xlu0 %259
    %261 = vrot.lane.b32.xlu0 %v224, 64
    %v262 = vpop.permute.xlu0 %261
    %263 = vrot.lane.b32.xlu0 %v225, 64
    %v264 = vpop.permute.xlu0 %263
    %265 = vrot.lane.b32.xlu0 %v226, 64
    %v266 = vpop.permute.xlu0 %265
    %267 = vrot.lane.b32.xlu0 %v227, 64
    %v268 = vpop.permute.xlu0 %267
    %269 = vrot.lane.b32.xlu0 %v228, 64
    %v270 = vpop.permute.xlu0 %269
    %271 = vrot.lane.b32.xlu0 %v229, 64
    %v272 = vpop.permute.xlu0 %271
    %273 = vrot.lane.b32.xlu0 %v230, 64
    %v274 = vpop.permute.xlu0 %273
    %275 = vrot.lane.b32.xlu0 %v231, 64
    %v276 = vpop.permute.xlu0 %275
    %277 = vrot.lane.b32.xlu0 %v232, 64
    %v278 = vpop.permute.xlu0 %277
    %279 = vrot.lane.b32.xlu0 %v233, 64
    %v280 = vpop.permute.xlu0 %279
    %281 = vrot.lane.b32.xlu0 %v234, 64
    %v282 = vpop.permute.xlu0 %281
    %v299 = vsel %vm57, %v252, 0.0
    %300 = vadd.xlane.f32.xlu0 %v299
    %v301 = vpop.xlane.xlu0 %300
    %v302 = vsel %vm57, %v254, 0.0
    %303 = vadd.xlane.f32.xlu0 %v302
    %v304 = vpop.xlane.xlu0 %303
    %v305 = vsel %vm57, %v256, 0.0
    %306 = vadd.xlane.f32.xlu0 %v305
    %v307 = vpop.xlane.xlu0 %306
    %v308 = vsel %vm57, %v258, 0.0
    %309 = vadd.xlane.f32.xlu0 %v308
    %v310 = vpop.xlane.xlu0 %309
    %v311 = vsel %vm57, %v260, 0.0
    %312 = vadd.xlane.f32.xlu0 %v311
    %v313 = vpop.xlane.xlu0 %312
    %v314 = vsel %vm57, %v262, 0.0
    %315 = vadd.xlane.f32.xlu0 %v314
    %v316 = vpop.xlane.xlu0 %315
    %v317 = vsel %vm57, %v264, 0.0
    %318 = vadd.xlane.f32.xlu0 %v317
    %v319 = vpop.xlane.xlu0 %318
    %v320 = vsel %vm57, %v266, 0.0
    %321 = vadd.xlane.f32.xlu0 %v320
    %v322 = vpop.xlane.xlu0 %321
    %v323 = vsel %vm57, %v268, 0.0
    %324 = vadd.xlane.f32.xlu0 %v323
    %v325 = vpop.xlane.xlu0 %324
    %v326 = vsel %vm57, %v270, 0.0
    %327 = vadd.xlane.f32.xlu0 %v326
    %v328 = vpop.xlane.xlu0 %327
    %v329 = vsel %vm57, %v272, 0.0
    %330 = vadd.xlane.f32.xlu0 %v329
    %v331 = vpop.xlane.xlu0 %330
    %v332 = vsel %vm57, %v274, 0.0
    %333 = vadd.xlane.f32.xlu0 %v332
    %v334 = vpop.xlane.xlu0 %333
    %v335 = vsel %vm57, %v276, 0.0
    %336 = vadd.xlane.f32.xlu0 %v335
    %v337 = vpop.xlane.xlu0 %336
    %v338 = vsel %vm57, %v278, 0.0
    %339 = vadd.xlane.f32.xlu0 %v338
    %v340 = vpop.xlane.xlu0 %339
    %v341 = vsel %vm57, %v280, 0.0
    %342 = vadd.xlane.f32.xlu0 %v341
    %v343 = vpop.xlane.xlu0 %342
    %v344 = vsel %vm57, %v282, 0.0
    %345 = vadd.xlane.f32.xlu0 %v344
    %v346 = vpop.xlane.xlu0 %345
    %v347 = vmul.f32 %v301, 0.015625
    %v348 = vmul.f32 %v304, 0.015625
    %v349 = vmul.f32 %v307, 0.015625
    %v350 = vmul.f32 %v310, 0.015625
    %v351 = vmul.f32 %v313, 0.015625
    %v352 = vmul.f32 %v316, 0.015625
    %v353 = vmul.f32 %v319, 0.015625
    %v354 = vmul.f32 %v322, 0.015625
    %v355 = vmul.f32 %v325, 0.015625
    %v356 = vmul.f32 %v328, 0.015625
    %v357 = vmul.f32 %v331, 0.015625
    %v358 = vmul.f32 %v334, 0.015625
    %v359 = vmul.f32 %v337, 0.015625
    %v360 = vmul.f32 %v340, 0.015625
    %v361 = vmul.f32 %v343, 0.015625
    %v362 = vmul.f32 %v346, 0.015625
    %v363 = vadd.f32 %v347, 1e-15
    %v364 = vadd.f32 %v348, 1e-15
    %v365 = vadd.f32 %v349, 1e-15
    %v366 = vadd.f32 %v350, 1e-15
    %v367 = vadd.f32 %v351, 1e-15
    %v368 = vadd.f32 %v352, 1e-15
    %v369 = vadd.f32 %v353, 1e-15
    %v370 = vadd.f32 %v354, 1e-15
    %v371 = vadd.f32 %v355, 1e-15
    %v372 = vadd.f32 %v356, 1e-15
    %v373 = vadd.f32 %v357, 1e-15
    %v374 = vadd.f32 %v358, 1e-15
    %v375 = vadd.f32 %v359, 1e-15
    %v376 = vadd.f32 %v360, 1e-15
    %v377 = vadd.f32 %v361, 1e-15
    %v378 = vadd.f32 %v362, 1e-15
    %v379 = vlog2.pop %v363
    %v380 = vmul.f32 %v379, 0.6931472
    %v381 = vlog2.pop %v364
    %v382 = vmul.f32 %v381, 0.6931472
    %v383 = vlog2.pop %v365
    %v384 = vmul.f32 %v383, 0.6931472
    %v385 = vlog2.pop %v366
    %v386 = vmul.f32 %v385, 0.6931472
    %v387 = vlog2.pop %v367
    %v388 = vmul.f32 %v387, 0.6931472
    %v389 = vlog2.pop %v368
    %v390 = vmul.f32 %v389, 0.6931472
    %v391 = vlog2.pop %v369
    %v392 = vmul.f32 %v391, 0.6931472
    %v393 = vlog2.pop %v370
    %v394 = vmul.f32 %v393, 0.6931472
    %v395 = vlog2.pop %v371
    %v396 = vmul.f32 %v395, 0.6931472
    %v397 = vlog2.pop %v372
    %v398 = vmul.f32 %v397, 0.6931472
    %v399 = vlog2.pop %v373
    %v400 = vmul.f32 %v399, 0.6931472
    %v401 = vlog2.pop %v374
    %v402 = vmul.f32 %v401, 0.6931472
    %v403 = vlog2.pop %v375
    %v404 = vmul.f32 %v403, 0.6931472
    %v405 = vlog2.pop %v376
    %v406 = vmul.f32 %v405, 0.6931472
    %v407 = vlog2.pop %v377
    %v408 = vmul.f32 %v407, 0.6931472
    %v409 = vlog2.pop %v378
    %v410 = vmul.f32 %v409, 0.6931472
    %411 = vxpose.xlu0.b32.start [1/16] %v380, 128
    %412 = vxpose.xlu0.b32.cont [2/16] %v382, 128
    %413 = vxpose.xlu0.b32.cont [3/16] %v384, 128
    %414 = vxpose.xlu0.b32.cont [4/16] %v386, 128
    %415 = vxpose.xlu0.b32.cont [5/16] %v388, 128
    %416 = vxpose.xlu0.b32.cont [6/16] %v390, 128
    %417 = vxpose.xlu0.b32.cont [7/16] %v392, 128
    %418 = vxpose.xlu0.b32.cont [8/16] %v394, 128
    %419 = vxpose.xlu0.b32.cont [9/16] %v396, 128
    %420 = vxpose.xlu0.b32.cont [10/16] %v398, 128
    %421 = vxpose.xlu0.b32.cont [11/16] %v400, 128
    %422 = vxpose.xlu0.b32.cont [12/16] %v402, 128
    %423 = vxpose.xlu0.b32.cont [13/16] %v404, 128
    %424 = vxpose.xlu0.b32.cont [14/16] %v406, 128
    %425 = vxpose.xlu0.b32.cont [15/16] %v408, 128
    %426 = vxpose.xlu0.b32.end [16/16] %v410, 128
    %v427 = vpop.trf.xlu0
    %v428 = vpop.trf.xlu0
    %v429 = vpop.trf.xlu0
    %v430 = vpop.trf.xlu0
    %v431 = vpop.trf.xlu0
    %v432 = vpop.trf.xlu0
    %v433 = vpop.trf.xlu0
    %v434 = vpop.trf.xlu0
    %v435 = vpop.trf.xlu0
    %v436 = vpop.trf.xlu0
    %v437 = vpop.trf.xlu0
    %v438 = vpop.trf.xlu0
    %v439 = vpop.trf.xlu0
    %v440 = vpop.trf.xlu0
    %v441 = vpop.trf.xlu0
    %v442 = vpop.trf.xlu0
    %443 = vst [vmem:[#allocation5 + $0x1] sm:$0x1] %v427
    // Predicated region
    $region10: #{tpu_custom_call.1} parent=1 // pred_check
      _
    $region11: #{tpu_custom_call.1} parent=1 // pred_check_branch
      %445 = sbr.rel (0) target = $region13
    $region12: #{tpu_custom_call.1} parent=1 // pred_region
      %447 = vsyncadd [#allocation4], 0
      %s449 = sshll.u32 [#allocation5], 4
      %s450 = int_to_ptr.vmem [resolvable:$true] %s449
      %s451 = sshll.u32 %s1, 4
      %s452 = int_to_ptr.hbm [resolvable:$true] %s451
      %454 = dma.vmem_to_hbm [thread:$0]  %s450, 32, %s452, [#allocation4]
    $region13: #{tpu_custom_call.1} parent=1 // pred_fallthru
      _
    // Predicated region
    $region14: #{tpu_custom_call.1} parent=1 // pred_check
      _
    $region15: #{tpu_custom_call.1} parent=1 // pred_check_branch
      %456 = sbr.rel (0) target = $region17
    $region16: #{tpu_custom_call.1} parent=1 // pred_region
      %458 = dma.done [#allocation4], 32
    $region17: #{tpu_custom_call.1} parent=1 // pred_fallthru
      _
    %459 = vsyncpa [#allocation3], 1
    %460 = vsyncpa [#allocation4], 1

</llo_original>
